<compile_context>
chip_gen: v6e
topology: v6e:2x2x1
jax: 0.10.0
libtpu: 0.0.40
codegen_flags: <defaults>
</compile_context>

<pallas_src>
import functools
import math

import jax
import jax.numpy as jnp
from jax.experimental import pallas as pl
from jax.experimental.pallas import tpu as pltpu


_MAX_ROW_TILE = 1024
_REDUCE_TILE_BUDGET = 24 * 1024 * 1024   # target double-buffered working set


def _round_up(v, m):
    return (v + m - 1) // m * m


def _sublane(dtype):
    """Sublane multiple for the dtype (8 f32 / 16 bf16 / 32 int8-fp8)."""
    itemsize = jnp.dtype(dtype).itemsize
    if itemsize == 2:
        return 16
    if itemsize == 1:
        return 32
    return 8


def _vmem_capacity_bytes():
    try:
        return int(pltpu.get_tpu_info().vmem_capacity_bytes)
    except Exception:
        pass
    try:
        kind = jax.devices()[0].device_kind.lower()
        if "v7" in kind:
            return 64 * 1024 * 1024
    except Exception:
        pass
    return 128 * 1024 * 1024


def _is_v6_or_newer():
    try:
        kind = jax.devices()[0].device_kind.lower()
        return ("v6" in kind) or ("v7" in kind)
    except Exception:
        return False


def _pick_row_tile(rows, bytes_per_row_db, sub, budget, min_steps=2):
    """Largest row tile (multiple of `sub`, <= 1024) whose double-buffered
    footprint `tile * bytes_per_row_db` stays under `budget`; clamped so the
    row grid has >= min_steps steps (feeds both v7x TensorCores)."""
    tile = _MAX_ROW_TILE
    while tile > sub and tile * bytes_per_row_db > budget:
        tile //= 2
    tile = max(tile, sub)
    tile = min(tile, _round_up(-(-rows // min_steps), sub))
    tile = min(tile, _round_up(rows, sub))
    return max(tile, sub)


def _pick_chan_tile(C):
    """Largest lane-aligned (multiple of 128, <= 1024) channel tile dividing
    C, or None (fallback path)."""
    best = None
    for tc in range(128, min(C, 1024) + 1, 128):
        if C % tc == 0:
            best = tc
    return best


def _pick_hidden_tile(H, C, mm_item, budget_bytes):
    """Largest hidden tile that is a multiple of 128, divides H exactly (a
    partial hidden block would contaminate the fc2 contraction), and keeps the
    double-buffered per-step weight blocks under budget."""
    cap = max(128, (budget_bytes // max(1, 4 * C * mm_item)) // 128 * 128)
    best = None
    for tH in range(128, H + 1, 128):
        if H % tH == 0 and tH <= cap:
            best = tH
    return best


# -----------------------------------------------------------------------------
# Kernels
# -----------------------------------------------------------------------------
def _combine(a, b, mode, out_dtype):
    if mode == "max":
        return jnp.maximum(a, b)
    if mode == "min":
        return jnp.minimum(a, b)
    # add / avg: accumulate in f32 (matters for bf16 inputs), cast back once.
    s = a.astype(jnp.float32) + b.astype(jnp.float32)
    if mode == "avg":
        s = s * jnp.float32(0.5)
    return s.astype(out_dtype)


def _reduce_pair_kernel(a_ref, b_ref, o_ref, *, mode):
    """Two lane-aligned half-tiles -> one output tile (pure VPU, no relayout)."""
    o_ref[...] = _combine(a_ref[...], b_ref[...], mode, o_ref.dtype)


def _reduce_strip_kernel(x_ref, o_ref, *, mode, half):
    """Fallback for C not a multiple of 128: split inside the kernel.
    NOTE: output last dim < 128 generates masked partial stores (small-C only)."""
    x = x_ref[...]
    o_ref[...] = _combine(x[:, :half], x[:, half:], mode, o_ref.dtype)


def _gelu_exact(h):
    # exact (erf-based) GELU, matching torch.nn.GELU default.
    return 0.5 * h * (1.0 + jax.lax.erf(h * jnp.float32(1.0 / math.sqrt(2.0))))


def _mlp_fuse_kernel(x_ref, g_ref, be_ref, w1_ref, b1_ref, w2_ref, b2_ref,
                     o_ref, *, use_ln, eps, mm_dtype):
    """[LayerNorm] -> fc1 -> GELU(exact) -> fc2 -> residual add on a row tile.

    Matmuls run in `mm_dtype` (bf16 on v6e/v7x) with f32 accumulation; LN /
    GELU / bias / residual stay in f32 on the VPU/EUP. gamma/beta/b1/b2 arrive
    pre-cast to f32 from the wrapper (hoisted casts). Garbage rows of a partial
    last block only affect their own (masked-on-store) output rows.
    """
    xin = x_ref[...]
    if use_ln:
        x = xin.astype(jnp.float32)
        mu = jnp.mean(x, axis=-1, keepdims=True)
        var = jnp.mean(jnp.square(x - mu), axis=-1, keepdims=True)
        h0 = (x - mu) * jax.lax.rsqrt(var + eps)
        h0 = h0 * g_ref[...] + be_ref[...]
        h0_mm = h0.astype(mm_dtype)
    else:
        # skip the f32 -> mm_dtype round trip when dtypes already match
        h0_mm = xin if xin.dtype == jnp.dtype(mm_dtype) else xin.astype(mm_dtype)

    h = jnp.dot(h0_mm, w1_ref[...],
                preferred_element_type=jnp.float32) + b1_ref[...]
    h = _gelu_exact(h)
    y = jnp.dot(h.astype(mm_dtype), w2_ref[...],
                preferred_element_type=jnp.float32) + b2_ref[...]
    o_ref[...] = (y + xin.astype(jnp.float32)).astype(o_ref.dtype)


def _mlp_fuse_kernel_hblock(x_ref, g_ref, be_ref, w1_ref, b1_ref, w2_ref,
                            b2_ref, o_ref, h0_scr, acc_scr, *, use_ln, eps,
                            mm_dtype):
    """Hidden-dim-blocked variant: grid = (row blocks, H blocks). fc1 output is
    produced one H-block at a time, fc2 partial products are accumulated into a
    f32 VMEM scratch; LN input is computed once (h==0) into a scratch."""
    h_idx = pl.program_id(1)

    @pl.when(h_idx == 0)
    def _():
        xin = x_ref[...]
        if use_ln:
            x = xin.astype(jnp.float32)
            mu = jnp.mean(x, axis=-1, keepdims=True)
            var = jnp.mean(jnp.square(x - mu), axis=-1, keepdims=True)
            h0 = (x - mu) * jax.lax.rsqrt(var + eps)
            h0 = h0 * g_ref[...] + be_ref[...]
            h0_scr[...] = h0.astype(mm_dtype)
        else:
            h0_scr[...] = (xin if xin.dtype == jnp.dtype(mm_dtype)
                           else xin.astype(mm_dtype))
        acc_scr[...] = jnp.zeros_like(acc_scr)

    h = jnp.dot(h0_scr[...], w1_ref[...],
                preferred_element_type=jnp.float32) + b1_ref[...]
    h = _gelu_exact(h)
    acc_scr[...] += jnp.dot(h.astype(mm_dtype), w2_ref[...],
                            preferred_element_type=jnp.float32)

    @pl.when(h_idx == pl.num_programs(1) - 1)
    def _():
        y = acc_scr[...] + b2_ref[...]
        o_ref[...] = (y + x_ref[...].astype(jnp.float32)).astype(o_ref.dtype)


# -----------------------------------------------------------------------------
# Wrappers
# -----------------------------------------------------------------------------
def _fuse_reduce(x, mode):
    B, N, C2 = x.shape
    assert C2 % 2 == 0, "two-stream input must have an even channel count"
    C = C2 // 2
    R = B * N
    dtype = x.dtype
    itemsize = jnp.dtype(dtype).itemsize
    sub = _sublane(dtype)
    vmem_cap = _vmem_capacity_bytes()
    x2 = x.reshape(R, C2)

    tc = _pick_chan_tile(C)
    if tc is not None:
        # Lane-aligned channels: the DMA/index_map does the half-split (pass
        # x2 twice) and we block over channels so per-step VMEM is bounded for
        # any C -> the kernel is a pure lane-aligned elementwise op.
        nc = C // tc
        tr = _pick_row_tile(R, 2 * 3 * tc * itemsize, sub, _REDUCE_TILE_BUDGET)
        footprint = 2 * 3 * tr * tc * itemsize
        vmem_limit = int(min(int(0.75 * vmem_cap),
                             max(32 * 1024 * 1024, 2 * footprint)))
        out = pl.pallas_call(
            functools.partial(_reduce_pair_kernel, mode=mode),
            out_shape=jax.ShapeDtypeStruct((R, C), dtype),
            grid=(pl.cdiv(R, tr), nc),
            in_specs=[
                pl.BlockSpec((tr, tc), lambda i, j: (i, j)),              # 1st half
                pl.BlockSpec((tr, tc), lambda i, j, nc=nc: (i, j + nc)),  # 2nd half
            ],
            out_specs=pl.BlockSpec((tr, tc), lambda i, j: (i, j)),
            compiler_params=pltpu.CompilerParams(
                dimension_semantics=("parallel", "parallel"),
                vmem_limit_bytes=vmem_limit),
        )(x2, x2)
    else:
        # Small / non-lane-aligned C: full (rows, 2C) strip per step, split in
        # kernel. Output last dim < 128 hits masked stores (documented).
        tr = _pick_row_tile(R, 2 * 3 * C * itemsize, sub, _REDUCE_TILE_BUDGET)
        footprint = 2 * 3 * tr * C * itemsize
        vmem_limit = int(min(int(0.75 * vmem_cap),
                             max(32 * 1024 * 1024, 2 * footprint)))
        out = pl.pallas_call(
            functools.partial(_reduce_strip_kernel, mode=mode, half=C),
            out_shape=jax.ShapeDtypeStruct((R, C), dtype),
            grid=(pl.cdiv(R, tr),),
            in_specs=[pl.BlockSpec((tr, C2), lambda i: (i, 0))],
            out_specs=pl.BlockSpec((tr, C), lambda i: (i, 0)),
            compiler_params=pltpu.CompilerParams(
                dimension_semantics=("parallel",),
                vmem_limit_bytes=vmem_limit),
        )(x2)

    return out.reshape(B, N, C)


def _fuse_mlp(x, gamma, beta, w1, b1, w2, b2, *, use_ln, eps=1e-5,
              mm_dtype=None, hidden_block=None):
    B, N, C = x.shape
    H = w1.shape[1]
    R = B * N

    if mm_dtype is None:
        # Default: bf16 into the MXU on v6e/v7x (f32 accumulation kept);
        # f32-in-MXU is an explicit opt-in via mm_dtype=jnp.float32.
        if x.dtype == jnp.dtype(jnp.bfloat16) or _is_v6_or_newer():
            mm_dtype = jnp.bfloat16
        else:
            mm_dtype = jnp.float32
    mm_dtype = jnp.dtype(mm_dtype)
    mm_item = mm_dtype.itemsize
    x_item = jnp.dtype(x.dtype).itemsize
    sub = _sublane(x.dtype)
    vmem_cap = _vmem_capacity_bytes()
    has_buffered = hasattr(pl, "Buffered")   # capability check, not try/except

    x2 = x.reshape(R, C)

    # Hoisted casts: parameters shipped in the dtype the kernel consumes.
    gamma_f = gamma.reshape(1, C).astype(jnp.float32)
    beta_f = beta.reshape(1, C).astype(jnp.float32)
    b1_f = b1.reshape(1, H).astype(jnp.float32)
    b2_f = b2.reshape(1, C).astype(jnp.float32)
    w1_m = w1.astype(mm_dtype)
    w2_m = w2.astype(mm_dtype)

    resident_w = 2 * C * H * mm_item * (1 if has_buffered else 2)
    use_hblock = hidden_block is not None or resident_w > int(0.35 * vmem_cap)

    tH = None
    if use_hblock:
        if hidden_block is not None:
            tH = int(hidden_block)
            assert H % tH == 0 and (tH % 128 == 0 or tH == H), \
                "hidden_block must divide H and be a multiple of 128"
        else:
            tH = _pick_hidden_tile(H, C, mm_item, 12 * 1024 * 1024)
        if tH is None or tH >= H:
            use_hblock = False   # nothing to block; fall back to resident weights

    budget = int(0.55 * vmem_cap)
    if use_hblock:
        per_row = (4 * C * x_item                        # x in + out, double-buffered
                   + (tH + 2 * C) * 4                    # f32 hidden block + temps
                   + (C + tH) * mm_item                  # mm-dtype copies
                   + C * (mm_item + 4))                  # h0 / acc scratches
        budget_rows = budget - 4 * C * tH * mm_item
        tr = _pick_row_tile(R, per_row, sub, budget_rows)
        est = (4 * C * tH * mm_item + 2 * tH * 4
               + tr * per_row + 3 * C * 4 * 2)
    else:
        per_row = (4 * C * x_item
                   + (H + 2 * C) * 4
                   + (C + H) * mm_item)
        budget_rows = budget - resident_w
        tr = _pick_row_tile(R, per_row, sub, budget_rows)
        est = (resident_w + tr * per_row
               + (3 * C + H) * 4 * (1 if has_buffered else 2))

    # Never request the full physical VMEM (on v7x 64 MiB is all there is).
    vmem_limit = int(min(int(0.8 * vmem_cap), max(32 * 1024 * 1024, 2 * est)))

    if not use_hblock:
        if has_buffered:
            def cspec(shape):
                # grid-invariant operands: single-buffer (DMA'd once)
                return pl.BlockSpec(shape, lambda i: (0, 0),
                                    pipeline_mode=pl.Buffered(1))
        else:
            def cspec(shape):
                return pl.BlockSpec(shape, lambda i: (0, 0))

        out = pl.pallas_call(
            functools.partial(_mlp_fuse_kernel, use_ln=use_ln, eps=eps,
                              mm_dtype=mm_dtype),
            out_shape=jax.ShapeDtypeStruct((R, C), x.dtype),
            grid=(pl.cdiv(R, tr),),
            in_specs=[
                pl.BlockSpec((tr, C), lambda i: (i, 0)),   # x row tile
                cspec((1, C)),                              # gamma (f32)
                cspec((1, C)),                              # beta  (f32)
                cspec((C, H)),                              # w1 (mm_dtype)
                cspec((1, H)),                              # b1 (f32)
                cspec((H, C)),                              # w2 (mm_dtype)
                cspec((1, C)),                              # b2 (f32)
            ],
            out_specs=pl.BlockSpec((tr, C), lambda i: (i, 0)),
            compiler_params=pltpu.CompilerParams(
                dimension_semantics=("parallel",),
                vmem_limit_bytes=vmem_limit),
        )(x2, gamma_f, beta_f, w1_m, b1_f, w2_m, b2_f)
    else:
        nh = H // tH
        out = pl.pallas_call(
            functools.partial(_mlp_fuse_kernel_hblock, use_ln=use_ln, eps=eps,
                              mm_dtype=mm_dtype),
            out_shape=jax.ShapeDtypeStruct((R, C), x.dtype),
            grid=(pl.cdiv(R, tr), nh),
            in_specs=[
                pl.BlockSpec((tr, C), lambda i, h: (i, 0)),   # x row tile
                pl.BlockSpec((1, C), lambda i, h: (0, 0)),    # gamma
                pl.BlockSpec((1, C), lambda i, h: (0, 0)),    # beta
                pl.BlockSpec((C, tH), lambda i, h: (0, h)),   # w1 H-block
                pl.BlockSpec((1, tH), lambda i, h: (0, h)),   # b1 H-block
                pl.BlockSpec((tH, C), lambda i, h: (h, 0)),   # w2 H-block
                pl.BlockSpec((1, C), lambda i, h: (0, 0)),    # b2
            ],
            out_specs=pl.BlockSpec((tr, C), lambda i, h: (i, 0)),
            scratch_shapes=[pltpu.VMEM((tr, C), mm_dtype),     # LN'd x
                            pltpu.VMEM((tr, C), jnp.float32)], # fc2 accumulator
            compiler_params=pltpu.CompilerParams(
                dimension_semantics=("parallel", "arbitrary"),
                vmem_limit_bytes=vmem_limit),
        )(x2, gamma_f, beta_f, w1_m, b1_f, w2_m, b2_f)

    return out.reshape(B, N, C)


class TwoStreamFusion:
    """JAX/Pallas port of the PyTorch TwoStreamFusion module (forward only).

    mm_dtype: dtype fed to the MXU for the concat_linear matmuls. Default
    (None): bf16 on v6e/v7x (f32 accumulation) or the input dtype elsewhere;
    pass jnp.float32 to force full-precision matmuls.
    hidden_block: force the hidden-dim-blocked MLP kernel with this H tile
    (auto-selected for large dim*hidden otherwise, e.g. on v7x's 64 MiB VMEM).
    """

    def __init__(self, mode, dim=None, key=None, mm_dtype=None,
                 hidden_block=None):
        self.mode = mode
        self.params = None
        self.use_ln = False
        self.mm_dtype = mm_dtype
        self.hidden_block = hidden_block
        if mode in ("add", "max", "min", "avg", "concat"):
            return
        if "concat_linear" not in mode:
            raise NotImplementedError(mode)

        parts = mode.split("_")
        if len(parts) == 2:
            dim_mult, drop_rate = 1.0, 0.0
        elif len(parts) == 3:
            dim_mult, drop_rate = float(parts[-1]), 0.0
        elif len(parts) == 4:
            dim_mult, drop_rate = float(parts[-2]), float(parts[-1])
        else:
            raise NotImplementedError(mode)
        self.drop_rate = drop_rate  # dropout is an inference-time no-op
        self.use_ln = mode.split("+")[0] == "ln"

        hidden = int(dim * dim_mult)
        key = key if key is not None else jax.random.PRNGKey(0)
        k1, k2, k3, k4 = jax.random.split(key, 4)
        w_dtype = jnp.float32 if mm_dtype is None else mm_dtype
        # nn.Linear weight (out,in) stored transposed as (in,out) for x @ W.
        self.params = dict(
            gamma=jnp.ones((dim,), jnp.float32),
            beta=jnp.zeros((dim,), jnp.float32),
            w1=(jax.random.normal(k1, (dim, hidden), jnp.float32) * 0.02
                ).astype(w_dtype),
            b1=jax.random.normal(k2, (hidden,), jnp.float32) * 0.02,
            w2=(jax.random.normal(k3, (hidden, dim), jnp.float32) * 0.02
                ).astype(w_dtype),
            b2=jax.random.normal(k4, (dim,), jnp.float32) * 0.02,
        )

    def __call__(self, x):
        if self.mode in ("add", "max", "min", "avg"):
            return _fuse_reduce(x, self.mode)
        if self.mode == "concat":
            return x  # NOOP per the reference module
        p = self.params
        return _fuse_mlp(x, p["gamma"], p["beta"], p["w1"], p["b1"],
                         p["w2"], p["b2"], use_ln=self.use_ln,
                         mm_dtype=self.mm_dtype,
                         hidden_block=self.hidden_block)


# -----------------------------------------------------------------------------
# Pure-JAX reference for verification
# -----------------------------------------------------------------------------
def _ref_forward(x, mode, params, use_ln):
    if mode in ("add", "max", "min", "avg"):
        a, b = jnp.split(x, 2, axis=2)
        s = jnp.stack([a, b], axis=0)
        if mode == "add":
            return s.sum(axis=0)
        if mode == "max":
            return s.max(axis=0)
        if mode == "min":
            return s.min(axis=0)
        return s.mean(axis=0)
    if mode == "concat":
        return x
    h = x
    if use_ln:
        mu = jnp.mean(h, axis=-1, keepdims=True)
        var = jnp.mean((h - mu) ** 2, axis=-1, keepdims=True)
        h = (h - mu) / jnp.sqrt(var + 1e-5) * params["gamma"] + params["beta"]
    h = h @ params["w1"].astype(jnp.float32) + params["b1"]
    h = jax.nn.gelu(h, approximate=False)
    h = h @ params["w2"].astype(jnp.float32) + params["b2"]
    return h + x


# -----------------------------------------------------------------------------
# Main
# -----------------------------------------------------------------------------
if __name__ == "__main__":
    key = jax.random.PRNGKey(0)
    kx, kp = jax.random.split(key)

    B = 2

    # Elementwise fusion modes: input has 2*C channels, output C channels.
    #   C=32  -> fallback (in-kernel split) path
    #   C=128 -> lane-aligned BlockSpec-split + channel-grid path
    #   N=9   -> exercises a partial (masked) last row-block, no wrapper pad
    for N in (8, 9):
        for C in (32, 128):
            x_reduce = jax.random.normal(kx, (B, N, 2 * C), jnp.float32)
            for mode in ("add", "max", "min", "avg", "concat"):
                mod = TwoStreamFusion(mode)
                out = jax.block_until_ready(mod(x_reduce))
                ref = _ref_forward(x_reduce, mode, None, False)
                assert out.shape == ref.shape, (mode, N, C, out.shape, ref.shape)
                assert jnp.allclose(out, ref, atol=1e-5, rtol=1e-5), (mode, N, C)

    # MLP fusion modes (with and without LayerNorm), residual add included.
    # Explicit f32-in-MXU for a tight-tolerance check vs the f32 reference.
    C = 32
    for N in (8, 9):   # N=9 -> partial last row-block through the MLP kernel
        x_mlp = jax.random.normal(kx, (B, N, C), jnp.float32)
        for mode in ("concat_linear_2.0", "ln+concat_linear_2.0_0.0"):
            mod = TwoStreamFusion(mode, dim=C, key=kp, mm_dtype=jnp.float32)
            out = jax.block_until_ready(mod(x_mlp))
            ref = _ref_forward(x_mlp, mode, mod.params, mod.use_ln)
            assert out.shape == ref.shape, (mode, N, out.shape, ref.shape)
            assert jnp.allclose(out, ref, atol=1e-4, rtol=1e-4), (mode, N)

    # Default dtype policy (bf16 into MXU on v6e/v7x, f32 accumulation) and the
    # explicit bf16 path; compared at a looser tolerance.
    N = 8
    x_mlp = jax.random.normal(kx, (B, N, C), jnp.float32)
    mode = "ln+concat_linear_2.0_0.0"
    for mm in (None, jnp.bfloat16):
        mod_l = TwoStreamFusion(mode, dim=C, key=kp, mm_dtype=mm)
        out = jax.block_until_ready(mod_l(x_mlp))
        ref = _ref_forward(x_mlp, mode, mod_l.params, mod_l.use_ln)
        assert out.shape == ref.shape
        assert jnp.allclose(out, ref, atol=2e-2, rtol=2e-2), ("mm_dtype", mm)

    # Hidden-dim-blocked MLP path (what large dim*hidden uses on v7x's 64 MiB
    # VMEM), forced via hidden_block so it is exercised at small shapes.
    Cb = 256
    x_big = jax.random.normal(kx, (B, N, Cb), jnp.float32)
    mod_hb = TwoStreamFusion("ln+concat_linear_2.0_0.0", dim=Cb, key=kp,
                             mm_dtype=jnp.float32, hidden_block=128)
    out = jax.block_until_ready(mod_hb(x_big))
    ref = _ref_forward(x_big, "ln+concat_linear_2.0_0.0", mod_hb.params,
                       mod_hb.use_ln)
    assert out.shape == ref.shape
    assert jnp.allclose(out, ref, atol=1e-4, rtol=1e-4), "hidden-blocked path"

    print("KERNEL_OK")
</pallas_src>

<mosaic_0001>
module attributes {stable_mosaic.version = 11 : i64} {
  func.func @_reduce_strip_kernel(%arg0: i32, %arg1: memref<8x64xf32, #tpu.memory_space<vmem>>, %arg2: memref<8x32xf32, #tpu.memory_space<vmem>>) attributes {dimension_semantics = [#tpu.dimension_semantics<parallel>], iteration_bounds = array<i64: 2>, scalar_prefetch = 0 : i64, scratch_operands = 0 : i64, tpu.core_type = #tpu.core_type<tc>, window_params = [{transform_indices = @transform_0, window_bounds = array<i64: 8, 64>}, {transform_indices = @transform_1, window_bounds = array<i64: 8, 32>}]} {
    %c0 = arith.constant 0 : index
    %c0_0 = arith.constant 0 : index
    %0 = vector.load %arg1[%c0, %c0_0] : memref<8x64xf32, #tpu.memory_space<vmem>>, vector<8x64xf32>
    %1 = vector.extract_strided_slice %0 {offsets = [0, 0], sizes = [8, 32], strides = [1, 1]} : vector<8x64xf32> to vector<8x32xf32>
    %2 = vector.extract_strided_slice %0 {offsets = [0, 32], sizes = [8, 32], strides = [1, 1]} : vector<8x64xf32> to vector<8x32xf32>
    %3 = arith.addf %1, %2 : vector<8x32xf32>
    %c0_1 = arith.constant 0 : index
    %c0_2 = arith.constant 0 : index
    %4 = vector.load %arg2[%c0_1, %c0_2] : memref<8x32xf32, #tpu.memory_space<vmem>>, vector<8x32xf32>
    tpu.vector_store %arg2[%c0_1, %c0_2], %3 {strides = array<i32>} : memref<8x32xf32, #tpu.memory_space<vmem>>, vector<8x32xf32>,
    return
  }
  func.func @transform_0(%arg0: i32) -> (i32, i32) {
    %c0_i32 = arith.constant 0 : i32
    %c0_i32_0 = arith.constant 0 : i32
    return %arg0, %c0_i32 : i32, i32
  }
  func.func @transform_1(%arg0: i32) -> (i32, i32) {
    %c0_i32 = arith.constant 0 : i32
    %c0_i32_0 = arith.constant 0 : i32
    return %arg0, %c0_i32 : i32, i32
  }
}

</mosaic_0001>

<llo_original>
// kernel: tpu_custom_call.1
$region0: #{tpu_custom_call.1}
  #allocation0 [shape = 'u32[]', space=smem, size = 0x4, offset = 0x4, fixed_abs, tag = 'smem constant byte address 0x4 - core index']
  #allocation1 [shape = 'u32[144,128]{1,0:T(1,128)}', space=vmem, size = 0x12000, scoped, tag = 'internal scratch']
  %s0 = inlined_call_operand.hbm [shape: f32[16,64], index: 0, kind: input, shape index: {}]
  %s1 = inlined_call_operand.hbm [shape: f32[16,32], index: 1, kind: output, shape index: {}]
  %s2 = sld [smem:[#allocation0]]
  $region41: #{tpu_custom_call.1} parent=0
    _
  %s4 = ssub.s32 1, %s2
  %s5 = scalar_select 0, %s4, %s2
  $region1: #{tpu_custom_call.1} parent=0
    #allocation2 [shape = 'u8[8192]{0}', space=vmem, size = 0x2000, scoped, tag = 'input window, operand 0']
    #allocation3 [shape = 's32[2]{0}', space=sflag, size = 0x8, scoped, tag = 'scoped memory for tpu_custom_call.1']
    #allocation4 [shape = 's32[2]{0}', space=sflag, size = 0x8, scoped, tag = 'scoped memory for tpu_custom_call.1']
    #allocation5 [shape = 'u8[8192]{0}', space=vmem, size = 0x2000, scoped, tag = 'output window, operand 0']
    %6 = vsyncpa [#allocation3], 0
    %s7 = scalar_lea.sflag [#allocation3], 1
    %8 = vsyncpa %s7, 0
    %9 = vsyncpa [#allocation4], 0
    %s10 = scalar_lea.sflag [#allocation4], 1
    %11 = vsyncpa %s10, 0
    loop: start=0, step=1, limit=4
    $region2: #{tpu_custom_call.1} parent=1 // loop_pre_header
      _
    $region3: #{tpu_custom_call.1} parent=1 // loop_header
      %s13 = sphi 0, %s17
      %p14 = scmp.ge.s32.totalorder %s13, 4
      %s23 = sphi 0, %s25
      %s26 = sphi 0, %s23
      %s27 = sphi 0, %s26
      %s43 = sphi 0, %s27
      %s49 = sphi 0, %s51
      %s52 = sphi 0, %s49
      %s53 = sphi 0, %s52
      %s69 = sphi 0, %s53
    $region4: #{tpu_custom_call.1} parent=1 // loop_header_branch
      %16 = sbr.rel (%p14) target = $region8
    $region5: #{tpu_custom_call.1} parent=1 // loop_body
      %s18 = ssub.s32 %s13, 1
      %s19 = ssub.s32 %s13, 2
      %s20 = sadd.s32 %s13, 1
      %s21 = ssub.s32 %s13, %s20
      %p22 = scmp.eq.s32.totalorder %s21, 0
      %s24 = sadd.s32 %s23, 1
      %s25 = scalar_select %p22, %s23, %s24
      %p28 = pneg %p22
      %p29 = scmp.eq.s32.totalorder %s13, 1
      %p30 = por %p28, %p29
      %p31 = scmp.ne.s32.totalorder %s23, %s26
      %p32 = scmp.eq.s32.totalorder %s13, 0
      %p33 = por %p31, %p32
      %p34 = scmp.ne.s32.totalorder %s23, %s26
      %p35 = scmp.eq.s32.totalorder %s18, 1
      %p36 = por %p34, %p35
      %p37 = scmp.ne.s32.totalorder %s26, %s27
      %p38 = scmp.eq.s32.totalorder %s18, 0
      %p39 = por %p37, %p38
      %p40 = scmp.ne.s32.totalorder %s26, %s27
      %p41 = scmp.eq.s32.totalorder %s19, 1
      %p42 = por %p40, %p41
      %p44 = scmp.ne.s32.totalorder %s27, %s43
      %p45 = scmp.eq.s32.totalorder %s19, 0
      %p46 = por %p44, %p45
      %s47 = ssub.s32 %s13, %s20
      %p48 = scmp.eq.s32.totalorder %s47, 0
      %s50 = sadd.s32 %s49, 1
      %s51 = scalar_select %p48, %s49, %s50
      %p54 = pneg %p48
      %p55 = scmp.eq.s32.totalorder %s13, 1
      %p56 = por %p54, %p55
      %p57 = scmp.ne.s32.totalorder %s49, %s52
      %p58 = scmp.eq.s32.totalorder %s13, 0
      %p59 = por %p57, %p58
      %p60 = scmp.ne.s32.totalorder %s49, %s52
      %p61 = scmp.eq.s32.totalorder %s18, 1
      %p62 = por %p60, %p61
      %p63 = scmp.ne.s32.totalorder %s52, %s53
      %p64 = scmp.eq.s32.totalorder %s18, 0
      %p65 = por %p63, %p64
      %p66 = scmp.ne.s32.totalorder %s52, %s53
      %p67 = scmp.eq.s32.totalorder %s19, 1
      %p68 = por %p66, %p67
      %p70 = scmp.ne.s32.totalorder %s53, %s69
      %p71 = scmp.eq.s32.totalorder %s19, 0
      %p72 = por %p70, %p71
      %p73 = scmp.le.s32.totalorder 1, %s13
      %p74 = scmp.lt.s32.totalorder %s13, 3
      %p75 = pnand %p73, %p74
      %p76 = pneg %p75
      // Predicated region
      $region9: #{tpu_custom_call.1} parent=5 // pred_check
        _
      $region10: #{tpu_custom_call.1} parent=5 // pred_check_branch
        %78 = sbr.rel (%p75) target = $region12
      $region11: #{tpu_custom_call.1} parent=5 // pred_region
        %s79 = ssub.s32 %s13, 1
      $region12: #{tpu_custom_call.1} parent=5 // pred_fallthru
        _
      %p80 = scmp.lt.s32.totalorder %s13, 2
      // Predicated region
      $region13: #{tpu_custom_call.1} parent=5 // pred_check
        %p81 = pneg %p80
      $region14: #{tpu_custom_call.1} parent=5 // pred_check_branch
        %83 = sbr.rel (%p81) target = $region16
      $region15: #{tpu_custom_call.1} parent=5 // pred_region
        // Predicated region
        $region17: #{tpu_custom_call.1} parent=15 // pred_check
          %p84 = pneg %p33
        $region18: #{tpu_custom_call.1} parent=15 // pred_check_branch
          %86 = sbr.rel (%p84) target = $region20
        $region19: #{tpu_custom_call.1} parent=15 // pred_region
          %s87 = sand.u32 %s23, 1
          %s88 = scalar_lea.sflag [#allocation3], %s87
          %s89 = sand.u32 %s23, 1
          %s90 = smul.addr %s89, 8
          %s91 = scalar_lea.vmem [#allocation2], %s90
          %s93 = ssub.s32 128, 128
          %94 = vsyncadd %s88, %s93
          %s95 = smul.addr %s13, 128
          %s96 = scalar_lea.hbm %s0, %s95
          %s98 = sshll.u32 %s91, 4
          %s99 = int_to_ptr.vmem [resolvable:$true] %s98
          %101 = dma.hbm_to_vmem [thread:$0]  %s96, 128, %s99, %s88
        $region20: #{tpu_custom_call.1} parent=15 // pred_fallthru
          _
      $region16: #{tpu_custom_call.1} parent=5 // pred_fallthru
        _
      %p102 = scmp.le.s32.totalorder 1, %s13
      %p103 = scmp.lt.s32.totalorder %s13, 3
      %p104 = pnand %p102, %p103
      %p105 = pneg %p104
      // Predicated region
      $region21: #{tpu_custom_call.1} parent=5 // pred_check
        _
      $region22: #{tpu_custom_call.1} parent=5 // pred_check_branch
        %107 = sbr.rel (%p104) target = $region24
      $region23: #{tpu_custom_call.1} parent=5 // pred_region
        %s108 = ssub.s32 %s13, 1
        %s109 = sand.u32 %s26, 1
        %s110 = scalar_lea.sflag [#allocation3], %s109
        %s111 = sand.u32 %s26, 1
        %s112 = smul.addr %s111, 8
        %s113 = scalar_lea.vmem [#allocation2], %s112
        // Predicated region
        $region25: #{tpu_custom_call.1} parent=23 // pred_check
          %p114 = pneg %p39
        $region26: #{tpu_custom_call.1} parent=23 // pred_check_branch
          %116 = sbr.rel (%p114) target = $region28
        $region27: #{tpu_custom_call.1} parent=23 // pred_region
          %117 = dma.done %s110, 128
        $region28: #{tpu_custom_call.1} parent=23 // pred_fallthru
          _
        %s118 = sand.u32 %s26, 1
        %s119 = scalar_lea.sflag [#allocation3], %s118
        %s120 = sand.u32 %s26, 1
        %s121 = smul.addr %s120, 8
        %s122 = scalar_lea.vmem [#allocation2], %s121
        %p123 = pneg %p39
        %p124 = pneg %p36
        %p125 = pneg %p65
        %p126 = pneg %p62
        %s127 = sand.u32 %s52, 1
        %s128 = scalar_lea.sflag [#allocation4], %s127
        %s129 = sand.u32 %s52, 1
        %s130 = smul.addr %s129, 8
        %s131 = scalar_lea.vmem [#allocation5], %s130
        %v132 = vld [vmem:[%s113] sm:$0xff]
        %134 = vrot.lane.b32.xlu0 %v132, 96
        %v135 = vpop.permute.xlu0 %134
        %v137 = vadd.f32 %v132, %v135
        %vm138 = vcmask 261120
        %139 = vst.msk [vmem:[%s131] sm:$0xff] %vm138, %v137
        %s140 = sand.u32 %s52, 1
        %s141 = scalar_lea.sflag [#allocation4], %s140
        %s142 = sand.u32 %s52, 1
        %s143 = smul.addr %s142, 8
        %s144 = scalar_lea.vmem [#allocation5], %s143
        // Predicated region
        $region29: #{tpu_custom_call.1} parent=23 // pred_check
          %p145 = pneg %p62
        $region30: #{tpu_custom_call.1} parent=23 // pred_check_branch
          %147 = sbr.rel (%p145) target = $region32
        $region31: #{tpu_custom_call.1} parent=23 // pred_region
          %s149 = ssub.s32 128, 128
          %150 = vsyncadd %s141, %s149
          %s151 = smul.addr %s18, 128
          %s152 = scalar_lea.hbm %s1, %s151
          %s154 = sshll.u32 %s144, 4
          %s155 = int_to_ptr.vmem [resolvable:$true] %s154
          %157 = dma.vmem_to_hbm [thread:$0]  %s155, 128, %s152, %s141
        $region32: #{tpu_custom_call.1} parent=23 // pred_fallthru
          _
      $region24: #{tpu_custom_call.1} parent=5 // pred_fallthru
        _
      %p158 = scmp.le.s32.totalorder 2, %s13
      // Predicated region
      $region33: #{tpu_custom_call.1} parent=5 // pred_check
        %p159 = pneg %p158
      $region34: #{tpu_custom_call.1} parent=5 // pred_check_branch
        %161 = sbr.rel (%p159) target = $region36
      $region35: #{tpu_custom_call.1} parent=5 // pred_region
        %s162 = ssub.s32 %s13, 2
        // Predicated region
        $region37: #{tpu_custom_call.1} parent=35 // pred_check
          %p163 = pneg %p68
        $region38: #{tpu_custom_call.1} parent=35 // pred_check_branch
          %165 = sbr.rel (%p163) target = $region40
        $region39: #{tpu_custom_call.1} parent=35 // pred_region
          %s166 = sand.u32 %s53, 1
          %s167 = scalar_lea.sflag [#allocation4], %s166
          %s168 = sand.u32 %s53, 1
          %s169 = smul.addr %s168, 8
          %s170 = scalar_lea.vmem [#allocation5], %s169
          %171 = dma.done %s167, 128
        $region40: #{tpu_custom_call.1} parent=35 // pred_fallthru
          _
      $region36: #{tpu_custom_call.1} parent=5 // pred_fallthru
        _
    $region6: #{tpu_custom_call.1} parent=1 // loop_footer
      %s17 = sadd.s32 1, %s13
    $region7: #{tpu_custom_call.1} parent=1 // loop_footer_branch
      %12 = sbr.rel target = $region3
    $region8: #{tpu_custom_call.1} parent=1 // loop_exit
      _
    %172 = vsyncpa [#allocation3], 1
    %s173 = scalar_lea.sflag [#allocation3], 1
    %174 = vsyncpa %s173, 1
    %175 = vsyncpa [#allocation4], 1
    %s176 = scalar_lea.sflag [#allocation4], 1
    %177 = vsyncpa %s176, 1

</llo_original>
